<compile_context>
chip_gen: v7x
topology: tpu7x:2x2x1
jax: 0.10.0
libtpu: 0.0.40
codegen_flags: <defaults>
</compile_context>

<pallas_src>
import jax
import jax.numpy as jnp
from jax.experimental import pallas as pl
from jax.experimental.pallas import tpu as pltpu

EPS = 1e-5  # nn.BatchNorm2d default eps


# ------------------------------ kernels -----------------------------------
def make_kernel(Wo, conv_shortcut):
    """Builds the fused BlazeBlock kernel.

    All refs are laid out channels-first: activations (C, L) with L = the
    flattened (image, h, w) lane axis of the current group of whole images.
    """

    def body(p_ref, w1_ref, b1_ref, dw_ref, dwb_ref, m_ref, pw_ref, b2_ref,
             sc_ref, ws_ref, bs_ref, o_ref):
        # ---- conv1 (5x5, im2col) + BN1 (scale folded into w1) + ReLU : MXU ----
        h1 = jnp.dot(w1_ref[...], p_ref[...], preferred_element_type=jnp.float32)
        h1 = jnp.maximum(h1 + b1_ref[...], 0.0)                 # (Cout, L) f32

        # ---- depthwise 3x3 (stride 1, pad 1): register-resident taps ----
        # Output lane l needs the input at lane l + (dh*Wo + dw); the shift is
        # a lane rotation (stays in vregs / XLU), and lanes whose neighbour
        # falls outside the image are zeroed by the precomputed edge masks
        # (this also kills the circular wrap at row/image boundaries).
        acc = h1 * dw_ref[:, 4:5] + dwb_ref[...]                # centre tap
        for t in (0, 1, 2, 3, 5, 6, 7, 8):
            off = (t // 3 - 1) * Wo + (t % 3 - 1)
            v = jnp.roll(h1, -off, axis=1)                      # x[:, l + off]
            acc = acc + v * dw_ref[:, t:t + 1] * m_ref[t:t + 1, :]

        # ---- pointwise 1x1 + BN2 (scale folded) + ReLU : MXU ----
        h3 = jnp.dot(pw_ref[...], acc.astype(pw_ref.dtype),
                     preferred_element_type=jnp.float32)
        h3 = jnp.maximum(h3 + b2_ref[...], 0.0)

        # ---- shortcut ----
        if conv_shortcut:   # 1x1 conv + BN (scale folded into ws)
            hs = jnp.dot(ws_ref[...], sc_ref[...],
                         preferred_element_type=jnp.float32) + bs_ref[...]
        else:               # identity: residual added directly in f32
            hs = sc_ref[...]
        o_ref[...] = (h3 + hs).astype(o_ref.dtype)

    if conv_shortcut:
        return body

    def body_identity(p_ref, w1_ref, b1_ref, dw_ref, dwb_ref, m_ref, pw_ref,
                      b2_ref, sc_ref, o_ref):
        return body(p_ref, w1_ref, b1_ref, dw_ref, dwb_ref, m_ref, pw_ref,
                    b2_ref, sc_ref, None, None, o_ref)

    return body_identity


# ------------------------------ wrapper ------------------------------------
def blaze_block_pallas(x_nchw, p, stride):
    B, Cin, H, W = x_nchw.shape
    Cout = p['w1'].shape[0]
    Ho = (H + 4 - 5) // stride + 1
    Wo = (W + 4 - 5) // stride + 1
    HW = Ho * Wo
    x = x_nchw.astype(jnp.float32)

    # ---- im2col for conv1 (XLA glue); K ordering (ci, kh, kw) matches
    #      w1.reshape(Cout, Cin*25); lane ordering is (b, ho, wo). ----
    # TODO(synk): at production resolutions, tile HW (with a 1-row halo for the
    # depthwise) or build the 25 taps in-kernel from the raw image to avoid the
    # 25x im2col HBM blow-up; negligible at these shapes.
    xp = jnp.pad(x, ((0, 0), (0, 0), (2, 2), (2, 2)))
    taps = [xp[:, :, kh:kh + stride * Ho:stride, kw:kw + stride * Wo:stride]
            for kh in range(5) for kw in range(5)]         # each (B, Cin, Ho, Wo)
    patches = jnp.stack(taps, axis=2)                       # (B, Cin, 25, Ho, Wo)
    patches = patches.transpose(1, 2, 0, 3, 4).reshape(Cin * 25, B * HW)
    patches = patches.astype(jnp.bfloat16)                  # (Cin*25, B*HW)

    # ---- fold BN scales into weight matrices (one-time, wrapper-side) ----
    s1 = p['g1'] / jnp.sqrt(p['v1'] + EPS)
    w1f = (p['w1'].reshape(Cout, Cin * 25) * s1[:, None]).astype(jnp.bfloat16)
    b1f = ((p['b1'] - p['mu1']) * s1 + p['be1']).reshape(Cout, 1).astype(jnp.float32)

    dwm = p['wdw'].reshape(Cout, 9).astype(jnp.float32)      # taps (kh*3+kw)
    dwb = p['bdw'].reshape(Cout, 1).astype(jnp.float32)

    s2 = p['g2'] / jnp.sqrt(p['v2'] + EPS)
    pwf = (p['wpw'][:, :, 0, 0] * s2[:, None]).astype(jnp.bfloat16)
    b2f = ((p['bpw'] - p['mu2']) * s2 + p['be2']).reshape(Cout, 1).astype(jnp.float32)

    conv_shortcut = 'wsc' in p
    if conv_shortcut:
        sc = x[:, :, ::stride, ::stride].transpose(1, 0, 2, 3).reshape(Cin, B * HW)
        sc = sc.astype(jnp.bfloat16)
        ss = p['gs'] / jnp.sqrt(p['vs'] + EPS)
        wsf = (p['wsc'][:, :, 0, 0] * ss[:, None]).astype(jnp.bfloat16)
        bsf = ((p['bsc'] - p['mus']) * ss + p['bes']).reshape(Cout, 1).astype(jnp.float32)
        Csc = Cin
    else:
        sc = x.transpose(1, 0, 2, 3).reshape(Cout, B * HW)   # keep residual in f32
        Csc = Cout

    # ---- group whole images per grid step so the lane axis is >= 128 ----
    gs = 1
    while gs < B and gs * HW < 128:
        gs += 1
    if B % gs != 0:      # keep whole images per step (depthwise neighbourhoods)
        gs = B
    L = gs * HW
    n_steps = B // gs

    # ---- per-tap edge masks (identical for every group of whole images) ----
    hh = jnp.arange(Ho, dtype=jnp.float32)
    ww = jnp.arange(Wo, dtype=jnp.float32)
    rows = []
    for t in range(9):
        dh, dw = t // 3 - 1, t % 3 - 1
        mh = jnp.ones((Ho,), jnp.float32) if dh == 0 else (
            (hh > 0).astype(jnp.float32) if dh < 0 else (hh < Ho - 1).astype(jnp.float32))
        mw = jnp.ones((Wo,), jnp.float32) if dw == 0 else (
            (ww > 0).astype(jnp.float32) if dw < 0 else (ww < Wo - 1).astype(jnp.float32))
        rows.append(jnp.tile((mh[:, None] * mw[None, :]).reshape(-1), gs))
    tapmask = jnp.stack(rows, axis=0)                        # (9, L)

    kernel = make_kernel(Wo, conv_shortcut)
    rep = lambda i: (0, 0)   # operands shared by every grid step (weights etc.)
    col = lambda i: (0, i)   # operands tiled along the flattened (b, h, w) lanes

    in_specs = [
        pl.BlockSpec((Cin * 25, L), col),    # conv1 im2col patches   (bf16)
        pl.BlockSpec((Cout, Cin * 25), rep), # conv1 weights (BN1 folded, bf16)
        pl.BlockSpec((Cout, 1), rep),        # conv1/bn1 bias         (f32)
        pl.BlockSpec((Cout, 9), rep),        # depthwise weights      (f32)
        pl.BlockSpec((Cout, 1), rep),        # depthwise bias         (f32)
        pl.BlockSpec((9, L), rep),           # per-tap edge masks     (f32)
        pl.BlockSpec((Cout, Cout), rep),     # pointwise (BN2 folded, bf16)
        pl.BlockSpec((Cout, 1), rep),        # pointwise/bn2 bias     (f32)
        pl.BlockSpec((Csc, L), col),         # shortcut input
    ]
    args = [patches, w1f, b1f, dwm, dwb, tapmask, pwf, b2f, sc]
    if conv_shortcut:
        in_specs += [pl.BlockSpec((Cout, Csc), rep),  # shortcut weights (bf16)
                     pl.BlockSpec((Cout, 1), rep)]    # shortcut bias    (f32)
        args += [wsf, bsf]

    out = pl.pallas_call(
        kernel,
        out_shape=jax.ShapeDtypeStruct((Cout, B * HW), jnp.float32),
        grid=(n_steps,),
        in_specs=in_specs,
        out_specs=pl.BlockSpec((Cout, L), col),
        compiler_params=pltpu.CompilerParams(
            dimension_semantics=("parallel",)),   # v7x: 2 TCs split the groups
    )(*args)

    return out.reshape(Cout, B, Ho, Wo).transpose(1, 0, 2, 3)   # back to NCHW


# ----------------- deterministic parameter construction --------------------
def make_params(key, cin, cout, stride):
    ks = list(jax.random.split(key, 24))

    def nrm(k, shape, scale=0.2):
        return (scale * jax.random.normal(k, shape)).astype(jnp.float32)

    def pos(k, shape):
        return (0.5 + jax.random.uniform(k, shape)).astype(jnp.float32)

    p = {
        'w1': nrm(ks[0], (cout, cin, 5, 5)), 'b1': nrm(ks[1], (cout,)),
        'g1': pos(ks[2], (cout,)), 'be1': nrm(ks[3], (cout,)),
        'mu1': nrm(ks[4], (cout,)), 'v1': pos(ks[5], (cout,)),
        'wdw': nrm(ks[6], (cout, 1, 3, 3)), 'bdw': nrm(ks[7], (cout,)),
        'wpw': nrm(ks[8], (cout, cout, 1, 1)), 'bpw': nrm(ks[9], (cout,)),
        'g2': pos(ks[10], (cout,)), 'be2': nrm(ks[11], (cout,)),
        'mu2': nrm(ks[12], (cout,)), 'v2': pos(ks[13], (cout,)),
    }
    if not (stride == 1 and cin == cout):
        p.update({
            'wsc': nrm(ks[14], (cout, cin, 1, 1)), 'bsc': nrm(ks[15], (cout,)),
            'gs': pos(ks[16], (cout,)), 'bes': nrm(ks[17], (cout,)),
            'mus': nrm(ks[18], (cout,)), 'vs': pos(ks[19], (cout,)),
        })
    return p


# --------------------- pure-JAX reference (for checking) -------------------
# TODO(synk): BatchNorm2d is implemented in inference mode (running stats);
#             PyTorch training-mode batch statistics are not reproduced.
def reference(x, p, stride):
    def conv(x, w, b, s, pad, groups=1):
        out = jax.lax.conv_general_dilated(
            x, w, window_strides=(s, s), padding=[(pad, pad), (pad, pad)],
            dimension_numbers=('NCHW', 'OIHW', 'NCHW'),
            feature_group_count=groups)
        return out + b[None, :, None, None]

    def bn(x, g, b, mu, var):
        return ((x - mu[None, :, None, None])
                / jnp.sqrt(var[None, :, None, None] + EPS)
                * g[None, :, None, None] + b[None, :, None, None])

    out = jax.nn.relu(bn(conv(x, p['w1'], p['b1'], stride, 2),
                         p['g1'], p['be1'], p['mu1'], p['v1']))
    out = conv(out, p['wdw'], p['bdw'], 1, 1, groups=out.shape[1])
    out = jax.nn.relu(bn(conv(out, p['wpw'], p['bpw'], 1, 0),
                         p['g2'], p['be2'], p['mu2'], p['v2']))
    if 'wsc' in p:
        sc = bn(conv(x, p['wsc'], p['bsc'], stride, 0),
                p['gs'], p['bes'], p['mus'], p['vs'])
    else:
        sc = x
    return out + sc


def _check(out, ref):
    # bf16 MXU operands (f32 accumulation) -> compare with a relative tolerance.
    err = float(jnp.max(jnp.abs(out - ref)))
    tol = 2e-2 * float(jnp.max(jnp.abs(ref))) + 1e-2
    assert err < tol, (err, tol)


if __name__ == "__main__":
    key = jax.random.PRNGKey(0)
    kx1, kp1, kx2, kp2 = jax.random.split(key, 4)

    # Case 1: stride=2, in_channels != out_channels -> conv+BN shortcut
    x1 = jax.random.normal(kx1, (2, 4, 16, 16), jnp.float32)
    p1 = make_params(kp1, 4, 8, 2)
    out1 = jax.block_until_ready(blaze_block_pallas(x1, p1, 2))
    ref1 = reference(x1, p1, 2)
    assert out1.shape == ref1.shape == (2, 8, 8, 8)
    _check(out1, ref1)

    # Case 2: stride=1, in_channels == out_channels -> identity shortcut
    x2 = jax.random.normal(kx2, (2, 8, 16, 16), jnp.float32)
    p2 = make_params(kp2, 8, 8, 1)
    out2 = jax.block_until_ready(blaze_block_pallas(x2, p2, 1))
    ref2 = reference(x2, p2, 1)
    assert out2.shape == ref2.shape == (2, 8, 16, 16)
    _check(out2, ref2)

    print("KERNEL_OK")
</pallas_src>

<mosaic_0001>
module attributes {stable_mosaic.version = 11 : i64} {
  func.func @body(%arg0: i32, %arg1: memref<100x128xbf16, #tpu.memory_space<vmem>>, %arg2: memref<8x100xbf16, #tpu.memory_space<vmem>>, %arg3: memref<8x1xf32, #tpu.memory_space<vmem>>, %arg4: memref<8x9xf32, #tpu.memory_space<vmem>>, %arg5: memref<8x1xf32, #tpu.memory_space<vmem>>, %arg6: memref<9x128xf32, #tpu.memory_space<vmem>>, %arg7: memref<8x8xbf16, #tpu.memory_space<vmem>>, %arg8: memref<8x1xf32, #tpu.memory_space<vmem>>, %arg9: memref<4x128xbf16, #tpu.memory_space<vmem>>, %arg10: memref<8x4xbf16, #tpu.memory_space<vmem>>, %arg11: memref<8x1xf32, #tpu.memory_space<vmem>>, %arg12: memref<8x128xf32, #tpu.memory_space<vmem>>) attributes {dimension_semantics = [#tpu.dimension_semantics<parallel>], iteration_bounds = array<i64: 1>, scalar_prefetch = 0 : i64, scratch_operands = 0 : i64, tpu.core_type = #tpu.core_type<tc>, window_params = [{transform_indices = @transform_0, window_bounds = array<i64: 100, 128>}, {pipeline_mode = #tpu.pipeline_mode<synchronous>, transform_indices = @transform_1, window_bounds = array<i64: 8, 100>}, {pipeline_mode = #tpu.pipeline_mode<synchronous>, transform_indices = @transform_2, window_bounds = array<i64: 8, 1>}, {pipeline_mode = #tpu.pipeline_mode<synchronous>, transform_indices = @transform_3, window_bounds = array<i64: 8, 9>}, {pipeline_mode = #tpu.pipeline_mode<synchronous>, transform_indices = @transform_4, window_bounds = array<i64: 8, 1>}, {pipeline_mode = #tpu.pipeline_mode<synchronous>, transform_indices = @transform_5, window_bounds = array<i64: 9, 128>}, {pipeline_mode = #tpu.pipeline_mode<synchronous>, transform_indices = @transform_6, window_bounds = array<i64: 8, 8>}, {pipeline_mode = #tpu.pipeline_mode<synchronous>, transform_indices = @transform_7, window_bounds = array<i64: 8, 1>}, {transform_indices = @transform_8, window_bounds = array<i64: 4, 128>}, {pipeline_mode = #tpu.pipeline_mode<synchronous>, transform_indices = @transform_9, window_bounds = array<i64: 8, 4>}, {pipeline_mode = #tpu.pipeline_mode<synchronous>, transform_indices = @transform_10, window_bounds = array<i64: 8, 1>}, {transform_indices = @transform_11, window_bounds = array<i64: 8, 128>}]} {
    %c0 = arith.constant 0 : index
    %c0_0 = arith.constant 0 : index
    %0 = vector.load %arg2[%c0, %c0_0] : memref<8x100xbf16, #tpu.memory_space<vmem>>, vector<8x100xbf16>
    %c0_1 = arith.constant 0 : index
    %c0_2 = arith.constant 0 : index
    %1 = vector.load %arg1[%c0_1, %c0_2] : memref<100x128xbf16, #tpu.memory_space<vmem>>, vector<100x128xbf16>
    %cst = arith.constant dense<0.000000e+00> : vector<8x128xf32>
    %2 = tpu.matmul %0, %1, %cst {dimension_numbers = #tpu.dot_dimension_numbers<[1], [0], [0], [1], [0, 0, 1, 1], [], []>} : vector<8x100xbf16>, vector<100x128xbf16>, vector<8x128xf32> -> vector<8x128xf32>
    %c0_3 = arith.constant 0 : index
    %c0_4 = arith.constant 0 : index
    %3 = vector.load %arg3[%c0_3, %c0_4] : memref<8x1xf32, #tpu.memory_space<vmem>>, vector<8x1xf32>
    %4 = vector.broadcast %3 : vector<8x1xf32> to vector<8x128xf32>
    %5 = arith.addf %2, %4 : vector<8x128xf32>
    %cst_5 = arith.constant 0.000000e+00 : f32
    %6 = vector.broadcast %cst_5 : f32 to vector<8x128xf32>
    %7 = arith.maximumf %5, %6 : vector<8x128xf32>
    %c0_6 = arith.constant 0 : index
    %c4 = arith.constant 4 : index
    %8 = vector.load %arg4[%c0_6, %c4] : memref<8x9xf32, #tpu.memory_space<vmem>>, vector<8x1xf32>
    %9 = vector.broadcast %8 : vector<8x1xf32> to vector<8x128xf32>
    %10 = arith.mulf %7, %9 : vector<8x128xf32>
    %c0_7 = arith.constant 0 : index
    %c0_8 = arith.constant 0 : index
    %11 = vector.load %arg5[%c0_7, %c0_8] : memref<8x1xf32, #tpu.memory_space<vmem>>, vector<8x1xf32>
    %12 = vector.broadcast %11 : vector<8x1xf32> to vector<8x128xf32>
    %13 = arith.addf %10, %12 : vector<8x128xf32>
    %14 = vector.extract_strided_slice %7 {offsets = [0, 119], sizes = [8, 9], strides = [1, 1]} : vector<8x128xf32> to vector<8x9xf32>
    %15 = vector.extract_strided_slice %7 {offsets = [0, 0], sizes = [8, 119], strides = [1, 1]} : vector<8x128xf32> to vector<8x119xf32>
    %16 = tpu.concatenate %14, %15 in 1 : vector<8x9xf32>, vector<8x119xf32> -> vector<8x128xf32>
    %c0_9 = arith.constant 0 : index
    %c0_10 = arith.constant 0 : index
    %17 = vector.load %arg4[%c0_9, %c0_10] : memref<8x9xf32, #tpu.memory_space<vmem>>, vector<8x1xf32>
    %18 = vector.broadcast %17 : vector<8x1xf32> to vector<8x128xf32>
    %19 = arith.mulf %16, %18 : vector<8x128xf32>
    %c0_11 = arith.constant 0 : index
    %c0_12 = arith.constant 0 : index
    %20 = vector.load %arg6[%c0_11, %c0_12] : memref<9x128xf32, #tpu.memory_space<vmem>>, vector<1x128xf32>
    %21 = vector.broadcast %20 : vector<1x128xf32> to vector<8x128xf32>
    %22 = arith.mulf %19, %21 : vector<8x128xf32>
    %23 = arith.addf %13, %22 : vector<8x128xf32>
    %24 = vector.extract_strided_slice %7 {offsets = [0, 120], sizes = [8, 8], strides = [1, 1]} : vector<8x128xf32> to vector<8x8xf32>
    %25 = vector.extract_strided_slice %7 {offsets = [0, 0], sizes = [8, 120], strides = [1, 1]} : vector<8x128xf32> to vector<8x120xf32>
    %26 = tpu.concatenate %24, %25 in 1 : vector<8x8xf32>, vector<8x120xf32> -> vector<8x128xf32>
    %c0_13 = arith.constant 0 : index
    %c1 = arith.constant 1 : index
    %27 = vector.load %arg4[%c0_13, %c1] : memref<8x9xf32, #tpu.memory_space<vmem>>, vector<8x1xf32>
    %28 = vector.broadcast %27 : vector<8x1xf32> to vector<8x128xf32>
    %29 = arith.mulf %26, %28 : vector<8x128xf32>
    %c1_14 = arith.constant 1 : index
    %c0_15 = arith.constant 0 : index
    %30 = vector.load %arg6[%c1_14, %c0_15] : memref<9x128xf32, #tpu.memory_space<vmem>>, vector<1x128xf32>
    %31 = vector.broadcast %30 : vector<1x128xf32> to vector<8x128xf32>
    %32 = arith.mulf %29, %31 : vector<8x128xf32>
    %33 = arith.addf %23, %32 : vector<8x128xf32>
    %34 = vector.extract_strided_slice %7 {offsets = [0, 121], sizes = [8, 7], strides = [1, 1]} : vector<8x128xf32> to vector<8x7xf32>
    %35 = vector.extract_strided_slice %7 {offsets = [0, 0], sizes = [8, 121], strides = [1, 1]} : vector<8x128xf32> to vector<8x121xf32>
    %36 = tpu.concatenate %34, %35 in 1 : vector<8x7xf32>, vector<8x121xf32> -> vector<8x128xf32>
    %c0_16 = arith.constant 0 : index
    %c2 = arith.constant 2 : index
    %37 = vector.load %arg4[%c0_16, %c2] : memref<8x9xf32, #tpu.memory_space<vmem>>, vector<8x1xf32>
    %38 = vector.broadcast %37 : vector<8x1xf32> to vector<8x128xf32>
    %39 = arith.mulf %36, %38 : vector<8x128xf32>
    %c2_17 = arith.constant 2 : index
    %c0_18 = arith.constant 0 : index
    %40 = vector.load %arg6[%c2_17, %c0_18] : memref<9x128xf32, #tpu.memory_space<vmem>>, vector<1x128xf32>
    %41 = vector.broadcast %40 : vector<1x128xf32> to vector<8x128xf32>
    %42 = arith.mulf %39, %41 : vector<8x128xf32>
    %43 = arith.addf %33, %42 : vector<8x128xf32>
    %44 = vector.extract_strided_slice %7 {offsets = [0, 127], sizes = [8, 1], strides = [1, 1]} : vector<8x128xf32> to vector<8x1xf32>
    %45 = vector.extract_strided_slice %7 {offsets = [0, 0], sizes = [8, 127], strides = [1, 1]} : vector<8x128xf32> to vector<8x127xf32>
    %46 = tpu.concatenate %44, %45 in 1 : vector<8x1xf32>, vector<8x127xf32> -> vector<8x128xf32>
    %c0_19 = arith.constant 0 : index
    %c3 = arith.constant 3 : index
    %47 = vector.load %arg4[%c0_19, %c3] : memref<8x9xf32, #tpu.memory_space<vmem>>, vector<8x1xf32>
    %48 = vector.broadcast %47 : vector<8x1xf32> to vector<8x128xf32>
    %49 = arith.mulf %46, %48 : vector<8x128xf32>
    %c3_20 = arith.constant 3 : index
    %c0_21 = arith.constant 0 : index
    %50 = vector.load %arg6[%c3_20, %c0_21] : memref<9x128xf32, #tpu.memory_space<vmem>>, vector<1x128xf32>
    %51 = vector.broadcast %50 : vector<1x128xf32> to vector<8x128xf32>
    %52 = arith.mulf %49, %51 : vector<8x128xf32>
    %53 = arith.addf %43, %52 : vector<8x128xf32>
    %54 = vector.extract_strided_slice %7 {offsets = [0, 1], sizes = [8, 127], strides = [1, 1]} : vector<8x128xf32> to vector<8x127xf32>
    %55 = vector.extract_strided_slice %7 {offsets = [0, 0], sizes = [8, 1], strides = [1, 1]} : vector<8x128xf32> to vector<8x1xf32>
    %56 = tpu.concatenate %54, %55 in 1 : vector<8x127xf32>, vector<8x1xf32> -> vector<8x128xf32>
    %c0_22 = arith.constant 0 : index
    %c5 = arith.constant 5 : index
    %57 = vector.load %arg4[%c0_22, %c5] : memref<8x9xf32, #tpu.memory_space<vmem>>, vector<8x1xf32>
    %58 = vector.broadcast %57 : vector<8x1xf32> to vector<8x128xf32>
    %59 = arith.mulf %56, %58 : vector<8x128xf32>
    %c5_23 = arith.constant 5 : index
    %c0_24 = arith.constant 0 : index
    %60 = vector.load %arg6[%c5_23, %c0_24] : memref<9x128xf32, #tpu.memory_space<vmem>>, vector<1x128xf32>
    %61 = vector.broadcast %60 : vector<1x128xf32> to vector<8x128xf32>
    %62 = arith.mulf %59, %61 : vector<8x128xf32>
    %63 = arith.addf %53, %62 : vector<8x128xf32>
    %64 = vector.extract_strided_slice %7 {offsets = [0, 7], sizes = [8, 121], strides = [1, 1]} : vector<8x128xf32> to vector<8x121xf32>
    %65 = vector.extract_strided_slice %7 {offsets = [0, 0], sizes = [8, 7], strides = [1, 1]} : vector<8x128xf32> to vector<8x7xf32>
    %66 = tpu.concatenate %64, %65 in 1 : vector<8x121xf32>, vector<8x7xf32> -> vector<8x128xf32>
    %c0_25 = arith.constant 0 : index
    %c6 = arith.constant 6 : index
    %67 = vector.load %arg4[%c0_25, %c6] : memref<8x9xf32, #tpu.memory_space<vmem>>, vector<8x1xf32>
    %68 = vector.broadcast %67 : vector<8x1xf32> to vector<8x128xf32>
    %69 = arith.mulf %66, %68 : vector<8x128xf32>
    %c6_26 = arith.constant 6 : index
    %c0_27 = arith.constant 0 : index
    %70 = vector.load %arg6[%c6_26, %c0_27] : memref<9x128xf32, #tpu.memory_space<vmem>>, vector<1x128xf32>
    %71 = vector.broadcast %70 : vector<1x128xf32> to vector<8x128xf32>
    %72 = arith.mulf %69, %71 : vector<8x128xf32>
    %73 = arith.addf %63, %72 : vector<8x128xf32>
    %74 = vector.extract_strided_slice %7 {offsets = [0, 8], sizes = [8, 120], strides = [1, 1]} : vector<8x128xf32> to vector<8x120xf32>
    %75 = vector.extract_strided_slice %7 {offsets = [0, 0], sizes = [8, 8], strides = [1, 1]} : vector<8x128xf32> to vector<8x8xf32>
    %76 = tpu.concatenate %74, %75 in 1 : vector<8x120xf32>, vector<8x8xf32> -> vector<8x128xf32>
    %c0_28 = arith.constant 0 : index
    %c7 = arith.constant 7 : index
    %77 = vector.load %arg4[%c0_28, %c7] : memref<8x9xf32, #tpu.memory_space<vmem>>, vector<8x1xf32>
    %78 = vector.broadcast %77 : vector<8x1xf32> to vector<8x128xf32>
    %79 = arith.mulf %76, %78 : vector<8x128xf32>
    %c7_29 = arith.constant 7 : index
    %c0_30 = arith.constant 0 : index
    %80 = vector.load %arg6[%c7_29, %c0_30] : memref<9x128xf32, #tpu.memory_space<vmem>>, vector<1x128xf32>
    %81 = vector.broadcast %80 : vector<1x128xf32> to vector<8x128xf32>
    %82 = arith.mulf %79, %81 : vector<8x128xf32>
    %83 = arith.addf %73, %82 : vector<8x128xf32>
    %84 = vector.extract_strided_slice %7 {offsets = [0, 9], sizes = [8, 119], strides = [1, 1]} : vector<8x128xf32> to vector<8x119xf32>
    %85 = vector.extract_strided_slice %7 {offsets = [0, 0], sizes = [8, 9], strides = [1, 1]} : vector<8x128xf32> to vector<8x9xf32>
    %86 = tpu.concatenate %84, %85 in 1 : vector<8x119xf32>, vector<8x9xf32> -> vector<8x128xf32>
    %c0_31 = arith.constant 0 : index
    %c8 = arith.constant 8 : index
    %87 = vector.load %arg4[%c0_31, %c8] : memref<8x9xf32, #tpu.memory_space<vmem>>, vector<8x1xf32>
    %88 = vector.broadcast %87 : vector<8x1xf32> to vector<8x128xf32>
    %89 = arith.mulf %86, %88 : vector<8x128xf32>
    %c8_32 = arith.constant 8 : index
    %c0_33 = arith.constant 0 : index
    %90 = vector.load %arg6[%c8_32, %c0_33] : memref<9x128xf32, #tpu.memory_space<vmem>>, vector<1x128xf32>
    %91 = vector.broadcast %90 : vector<1x128xf32> to vector<8x128xf32>
    %92 = arith.mulf %89, %91 : vector<8x128xf32>
    %93 = arith.addf %83, %92 : vector<8x128xf32>
    %c0_34 = arith.constant 0 : index
    %c0_35 = arith.constant 0 : index
    %94 = vector.load %arg7[%c0_34, %c0_35] : memref<8x8xbf16, #tpu.memory_space<vmem>>, vector<8x8xbf16>
    %95 = arith.truncf %93 : vector<8x128xf32> to vector<8x128xbf16>
    %cst_36 = arith.constant dense<0.000000e+00> : vector<8x128xf32>
    %96 = tpu.matmul %94, %95, %cst_36 {dimension_numbers = #tpu.dot_dimension_numbers<[1], [0], [0], [1], [0, 0, 1, 1], [], []>} : vector<8x8xbf16>, vector<8x128xbf16>, vector<8x128xf32> -> vector<8x128xf32>
    %c0_37 = arith.constant 0 : index
    %c0_38 = arith.constant 0 : index
    %97 = vector.load %arg8[%c0_37, %c0_38] : memref<8x1xf32, #tpu.memory_space<vmem>>, vector<8x1xf32>
    %98 = vector.broadcast %97 : vector<8x1xf32> to vector<8x128xf32>
    %99 = arith.addf %96, %98 : vector<8x128xf32>
    %cst_39 = arith.constant 0.000000e+00 : f32
    %100 = vector.broadcast %cst_39 : f32 to vector<8x128xf32>
    %101 = arith.maximumf %99, %100 : vector<8x128xf32>
    %c0_40 = arith.constant 0 : index
    %c0_41 = arith.constant 0 : index
    %102 = vector.load %arg10[%c0_40, %c0_41] : memref<8x4xbf16, #tpu.memory_space<vmem>>, vector<8x4xbf16>
    %c0_42 = arith.constant 0 : index
    %c0_43 = arith.constant 0 : index
    %103 = vector.load %arg9[%c0_42, %c0_43] : memref<4x128xbf16, #tpu.memory_space<vmem>>, vector<4x128xbf16>
    %cst_44 = arith.constant dense<0.000000e+00> : vector<8x128xf32>
    %104 = tpu.matmul %102, %103, %cst_44 {dimension_numbers = #tpu.dot_dimension_numbers<[1], [0], [0], [1], [0, 0, 1, 1], [], []>} : vector<8x4xbf16>, vector<4x128xbf16>, vector<8x128xf32> -> vector<8x128xf32>
    %c0_45 = arith.constant 0 : index
    %c0_46 = arith.constant 0 : index
    %105 = vector.load %arg11[%c0_45, %c0_46] : memref<8x1xf32, #tpu.memory_space<vmem>>, vector<8x1xf32>
    %106 = vector.broadcast %105 : vector<8x1xf32> to vector<8x128xf32>
    %107 = arith.addf %104, %106 : vector<8x128xf32>
    %108 = arith.addf %101, %107 : vector<8x128xf32>
    %c0_47 = arith.constant 0 : index
    %c0_48 = arith.constant 0 : index
    %109 = vector.load %arg12[%c0_47, %c0_48] : memref<8x128xf32, #tpu.memory_space<vmem>>, vector<8x128xf32>
    tpu.vector_store %arg12[%c0_47, %c0_48], %108 {strides = array<i32>} : memref<8x128xf32, #tpu.memory_space<vmem>>, vector<8x128xf32>,
    return
  }
  func.func @transform_0(%arg0: i32) -> (i32, i32) {
    %c0_i32 = arith.constant 0 : i32
    %c0_i32_0 = arith.constant 0 : i32
    return %c0_i32, %arg0 : i32, i32
  }
  func.func @transform_1(%arg0: i32) -> (i32, i32) {
    %c0_i32 = arith.constant 0 : i32
    %c0_i32_0 = arith.constant 0 : i32
    %c0_i32_1 = arith.constant 0 : i32
    return %c0_i32, %c0_i32_0 : i32, i32
  }
  func.func @transform_2(%arg0: i32) -> (i32, i32) {
    %c0_i32 = arith.constant 0 : i32
    %c0_i32_0 = arith.constant 0 : i32
    %c0_i32_1 = arith.constant 0 : i32
    return %c0_i32, %c0_i32_0 : i32, i32
  }
  func.func @transform_3(%arg0: i32) -> (i32, i32) {
    %c0_i32 = arith.constant 0 : i32
    %c0_i32_0 = arith.constant 0 : i32
    %c0_i32_1 = arith.constant 0 : i32
    return %c0_i32, %c0_i32_0 : i32, i32
  }
  func.func @transform_4(%arg0: i32) -> (i32, i32) {
    %c0_i32 = arith.constant 0 : i32
    %c0_i32_0 = arith.constant 0 : i32
    %c0_i32_1 = arith.constant 0 : i32
    return %c0_i32, %c0_i32_0 : i32, i32
  }
  func.func @transform_5(%arg0: i32) -> (i32, i32) {
    %c0_i32 = arith.constant 0 : i32
    %c0_i32_0 = arith.constant 0 : i32
    %c0_i32_1 = arith.constant 0 : i32
    return %c0_i32, %c0_i32_0 : i32, i32
  }
  func.func @transform_6(%arg0: i32) -> (i32, i32) {
    %c0_i32 = arith.constant 0 : i32
    %c0_i32_0 = arith.constant 0 : i32
    %c0_i32_1 = arith.constant 0 : i32
    return %c0_i32, %c0_i32_0 : i32, i32
  }
  func.func @transform_7(%arg0: i32) -> (i32, i32) {
    %c0_i32 = arith.constant 0 : i32
    %c0_i32_0 = arith.constant 0 : i32
    %c0_i32_1 = arith.constant 0 : i32
    return %c0_i32, %c0_i32_0 : i32, i32
  }
  func.func @transform_8(%arg0: i32) -> (i32, i32) {
    %c0_i32 = arith.constant 0 : i32
    %c0_i32_0 = arith.constant 0 : i32
    return %c0_i32, %arg0 : i32, i32
  }
  func.func @transform_9(%arg0: i32) -> (i32, i32) {
    %c0_i32 = arith.constant 0 : i32
    %c0_i32_0 = arith.constant 0 : i32
    %c0_i32_1 = arith.constant 0 : i32
    return %c0_i32, %c0_i32_0 : i32, i32
  }
  func.func @transform_10(%arg0: i32) -> (i32, i32) {
    %c0_i32 = arith.constant 0 : i32
    %c0_i32_0 = arith.constant 0 : i32
    %c0_i32_1 = arith.constant 0 : i32
    return %c0_i32, %c0_i32_0 : i32, i32
  }
  func.func @transform_11(%arg0: i32) -> (i32, i32) {
    %c0_i32 = arith.constant 0 : i32
    %c0_i32_0 = arith.constant 0 : i32
    return %c0_i32, %arg0 : i32, i32
  }
}

</mosaic_0001>

<llo_original>
// kernel: tpu_custom_call.1
$region0: #{tpu_custom_call.1}
  #allocation0 [shape = 'u32[]', space=smem, size = 0x4, offset = 0x4, fixed_abs, tag = 'smem constant byte address 0x4 - core index']
  #allocation1 [shape = 'u32[144,128]{1,0:T(1,128)}', space=vmem, size = 0x12000, scoped, tag = 'internal scratch']
  %s0 = inlined_call_operand.hbm [shape: bf16[100,128], index: 0, kind: input, shape index: {}]
  %s1 = inlined_call_operand.vmem [shape: bf16[8,100], index: 1, kind: input, shape index: {}]
  %s2 = inlined_call_operand.vmem [shape: f32[8,1], index: 2, kind: input, shape index: {}]
  %s3 = inlined_call_operand.vmem [shape: f32[8,9], index: 3, kind: input, shape index: {}]
  %s4 = inlined_call_operand.vmem [shape: f32[8,1], index: 4, kind: input, shape index: {}]
  %s5 = inlined_call_operand.vmem [shape: f32[9,128], index: 5, kind: input, shape index: {}]
  %s6 = inlined_call_operand.vmem [shape: bf16[8,8], index: 6, kind: input, shape index: {}]
  %s7 = inlined_call_operand.vmem [shape: f32[8,1], index: 7, kind: input, shape index: {}]
  %s8 = inlined_call_operand.vmem [shape: bf16[4,128], index: 8, kind: input, shape index: {}]
  %s9 = inlined_call_operand.vmem [shape: bf16[8,4], index: 9, kind: input, shape index: {}]
  %s10 = inlined_call_operand.vmem [shape: f32[8,1], index: 10, kind: input, shape index: {}]
  %s11 = inlined_call_operand.hbm [shape: f32[8,128], index: 11, kind: output, shape index: {}]
  %s12 = sld [smem:[#allocation0]]
  $region58: #{tpu_custom_call.1} parent=0
    _
  %s14 = ssub.s32 1, %s12
  %s15 = scalar_select 0, %s14, %s12
  $region1: #{tpu_custom_call.1} parent=0
    #allocation2 [shape = 'u8[26624]{0}', space=vmem, size = 0x6800, scoped, tag = 'input window, operand 0, single buffered']
    #allocation3 [shape = 's32[1]{0}', space=sflag, size = 0x4, scoped, tag = 'scoped memory for tpu_custom_call.1']
    #allocation4 [shape = 's32[1]{0}', space=sflag, size = 0x4, scoped, tag = 'scoped memory for tpu_custom_call.1']
    #allocation5 [shape = 'u8[4096]{0}', space=vmem, size = 0x1000, scoped, tag = 'output window, operand 0, single buffered']
    %16 = vsyncpa [#allocation3], 0
    %17 = vsyncpa [#allocation4], 0
    // Predicated region
    $region2: #{tpu_custom_call.1} parent=1 // pred_check
      _
    $region3: #{tpu_custom_call.1} parent=1 // pred_check_branch
      %19 = sbr.rel (0) target = $region5
    $region4: #{tpu_custom_call.1} parent=1 // pred_region
      %s21 = ssub.s32 832, 832
      %22 = vsyncadd [#allocation3], %s21
      %s23 = sshll.u32 [#allocation2], 4
      %s24 = int_to_ptr.vmem [resolvable:$true] %s23
      %29 = dma.hbm_to_vmem [thread:$0]  %s0, 832, %s24, [#allocation3], 64, 64, 4
    $region5: #{tpu_custom_call.1} parent=1 // pred_fallthru
      _
    // Predicated region
    $region6: #{tpu_custom_call.1} parent=1 // pred_check
      _
    $region7: #{tpu_custom_call.1} parent=1 // pred_check_branch
      %31 = sbr.rel (0) target = $region9
    $region8: #{tpu_custom_call.1} parent=1 // pred_region
      _
    $region9: #{tpu_custom_call.1} parent=1 // pred_fallthru
      _
    // Predicated region
    $region10: #{tpu_custom_call.1} parent=1 // pred_check
      _
    $region11: #{tpu_custom_call.1} parent=1 // pred_check_branch
      %33 = sbr.rel (0) target = $region13
    $region12: #{tpu_custom_call.1} parent=1 // pred_region
      _
    $region13: #{tpu_custom_call.1} parent=1 // pred_fallthru
      _
    // Predicated region
    $region14: #{tpu_custom_call.1} parent=1 // pred_check
      _
    $region15: #{tpu_custom_call.1} parent=1 // pred_check_branch
      %35 = sbr.rel (0) target = $region17
    $region16: #{tpu_custom_call.1} parent=1 // pred_region
      _
    $region17: #{tpu_custom_call.1} parent=1 // pred_fallthru
      _
    // Predicated region
    $region18: #{tpu_custom_call.1} parent=1 // pred_check
      _
    $region19: #{tpu_custom_call.1} parent=1 // pred_check_branch
      %37 = sbr.rel (0) target = $region21
    $region20: #{tpu_custom_call.1} parent=1 // pred_region
      _
    $region21: #{tpu_custom_call.1} parent=1 // pred_fallthru
      _
    // Predicated region
    $region22: #{tpu_custom_call.1} parent=1 // pred_check
      _
    $region23: #{tpu_custom_call.1} parent=1 // pred_check_branch
      %39 = sbr.rel (0) target = $region25
    $region24: #{tpu_custom_call.1} parent=1 // pred_region
      _
    $region25: #{tpu_custom_call.1} parent=1 // pred_fallthru
      _
    // Predicated region
    $region26: #{tpu_custom_call.1} parent=1 // pred_check
      _
    $region27: #{tpu_custom_call.1} parent=1 // pred_check_branch
      %41 = sbr.rel (0) target = $region29
    $region28: #{tpu_custom_call.1} parent=1 // pred_region
      _
    $region29: #{tpu_custom_call.1} parent=1 // pred_fallthru
      _
    // Predicated region
    $region30: #{tpu_custom_call.1} parent=1 // pred_check
      _
    $region31: #{tpu_custom_call.1} parent=1 // pred_check_branch
      %43 = sbr.rel (0) target = $region33
    $region32: #{tpu_custom_call.1} parent=1 // pred_region
      _
    $region33: #{tpu_custom_call.1} parent=1 // pred_fallthru
      _
    // Predicated region
    $region34: #{tpu_custom_call.1} parent=1 // pred_check
      _
    $region35: #{tpu_custom_call.1} parent=1 // pred_check_branch
      %45 = sbr.rel (0) target = $region37
    $region36: #{tpu_custom_call.1} parent=1 // pred_region
      _
    $region37: #{tpu_custom_call.1} parent=1 // pred_fallthru
      _
    // Predicated region
    $region38: #{tpu_custom_call.1} parent=1 // pred_check
      _
    $region39: #{tpu_custom_call.1} parent=1 // pred_check_branch
      %47 = sbr.rel (0) target = $region41
    $region40: #{tpu_custom_call.1} parent=1 // pred_region
      _
    $region41: #{tpu_custom_call.1} parent=1 // pred_fallthru
      _
    // Predicated region
    $region42: #{tpu_custom_call.1} parent=1 // pred_check
      _
    $region43: #{tpu_custom_call.1} parent=1 // pred_check_branch
      %49 = sbr.rel (0) target = $region45
    $region44: #{tpu_custom_call.1} parent=1 // pred_region
      _
    $region45: #{tpu_custom_call.1} parent=1 // pred_fallthru
      _
    // Predicated region
    $region46: #{tpu_custom_call.1} parent=1 // pred_check
      _
    $region47: #{tpu_custom_call.1} parent=1 // pred_check_branch
      %51 = sbr.rel (0) target = $region49
    $region48: #{tpu_custom_call.1} parent=1 // pred_region
      %52 = dma.done [#allocation3], 832
    $region49: #{tpu_custom_call.1} parent=1 // pred_fallthru
      _
    %v54 = vld [vmem:[%s1] sm:$0xf]
    %v55 = vld [vmem:[#allocation2] sm:$0xf]
    %v56 = vld [vmem:[#allocation2 + $0x4] sm:$0xf]
    %v57 = vld [vmem:[#allocation2 + $0x8] sm:$0xf]
    %v58 = vld [vmem:[#allocation2 + $0xc] sm:$0xf]
    %v59 = vld [vmem:[#allocation2 + $0x10] sm:$0xf]
    %v60 = vld [vmem:[#allocation2 + $0x14] sm:$0xf]
    %v61 = vld [vmem:[#allocation2 + $0x18] sm:$0xf]
    %v62 = vld [vmem:[#allocation2 + $0x1c] sm:$0xf]
    %v63 = vld [vmem:[#allocation2 + $0x20] sm:$0xf]
    %v64 = vld [vmem:[#allocation2 + $0x24] sm:$0xf]
    %v65 = vld [vmem:[#allocation2 + $0x28] sm:$0xf]
    %v66 = vld [vmem:[#allocation2 + $0x2c] sm:$0xf]
    %v67 = vld [vmem:[#allocation2 + $0x30] sm:$0x3]
    %v68 = vld [vmem:[%s2] sm:$0xff]
    %70 = vset.pattern.permute.xlu0 0
    %71 = vperm.xlu0 %70, %v68
    %v72 = vpop.permute.xlu0 %71
    %v87 = vunpack.c.l.b16 %v55
    %v88 = vunpack.c.l.b16 %v56
    %v89 = vunpack.c.l.b16 %v57
    %v90 = vunpack.c.l.b16 %v58
    %v91 = vunpack.c.l.b16 %v59
    %v92 = vunpack.c.l.b16 %v60
    %v93 = vunpack.c.l.b16 %v61
    %v94 = vunpack.c.l.b16 %v62
    %v95 = vunpack.c.l.b16 %v63
    %v96 = vunpack.c.l.b16 %v64
    %v97 = vunpack.c.l.b16 %v65
    %v98 = vunpack.c.l.b16 %v66
    %v99 = vunpack.c.l.b16 %v67
    %v100 = vpack.c.b16 %v88, %v87
    %v101 = vpack.c.b16 %v90, %v89
    %v102 = vpack.c.b16 %v92, %v91
    %v103 = vpack.c.b16 %v94, %v93
    %v104 = vpack.c.b16 %v96, %v95
    %v105 = vpack.c.b16 %v98, %v97
    %v106 = vpack.c.b16 %v99, %v99
    %vm113 = vcmask 818176
    %v115 = vsel %vm113, %v54, 0
    %vm117 = vcmask 1041408
    %v119 = vsel %vm117, %v106, 0
    %121 = vmatprep.subr.bf16.mxu0 0
    %122 = vmatpush1.bf16.msra.mxu0 %v100
    %123 = vmatprep.subr.bf16.mxu0 0
    %124 = vmatpush1.bf16.msra.mxu0 %v101
    %125 = vmatprep.subr.bf16.mxu0 0
    %126 = vmatpush1.bf16.msra.mxu0 %v102
    %127 = vmatprep.subr.bf16.mxu0 0
    %128 = vmatpush1.bf16.msra.mxu0 %v103
    %129 = vmatprep.subr.bf16.mxu0 0
    %130 = vmatpush1.bf16.msra.mxu0 %v104
    %131 = vmatprep.subr.bf16.mxu0 0
    %132 = vmatpush1.bf16.msra.mxu0 %v105
    %133 = vmatprep.subr.bf16.mxu0 0
    %134 = vmatpush1.bf16.msra.mxu0 %v119
    %135 = vmatprep.subr.bf16.mxu0 0
    %136 = vmatpush1.bf16.msra.mxu0 0
    %137 = vmatprep.subr.bf16.mxu0 0
    %138 = vmatpush1.bf16.msra.mxu0 0
    %139 = vmatprep.subr.bf16.mxu0 0
    %140 = vmatpush1.bf16.msra.mxu0 0
    %141 = vmatprep.subr.bf16.mxu0 0
    %142 = vmatpush1.bf16.msra.mxu0 0
    %143 = vmatprep.subr.bf16.mxu0 0
    %144 = vmatpush1.bf16.msra.mxu0 0
    %145 = vmatprep.subr.bf16.mxu0 0
    %146 = vmatpush1.bf16.msra.mxu0 0
    %147 = vmatprep.subr.bf16.mxu0 0
    %148 = vmatpush1.bf16.msra.mxu0 0
    %149 = vmatprep.subr.bf16.mxu0 0
    %150 = vmatpush1.bf16.msra.mxu0 0
    %151 = vmatprep.subr.bf16.mxu0 0
    %152 = vmatpush1.bf16.msra.mxu0 0
    %153 = vmatprep.mubr.bf16.mxu0 0
    %154 = vmatmul.mubr.bf16.gmra.mrb[0].mxu0 %v115
    %v155 = vpop.f32.mrb[0].mxu0
    %v156 = vadd.f32 %v72, %v155
    %v157 = vpop.f32.mrb[0].mxu0
    %v158 = vpop.f32.mrb[0].mxu0
    %v159 = vpop.f32.mrb[0].mxu0
    %160 = vdwg.mxu0
    %v161 = vmax.f32 %v156, 0.0
    %v162 = vld [vmem:[%s3] sm:$0xff]
    %164 = vset.pattern.permute.xlu0 4
    %165 = vperm.xlu0 %164, %v162
    %v166 = vpop.permute.xlu0 %165
    %v168 = vmul.f32 %v161, %v166
    %v169 = vld [vmem:[%s4] sm:$0xff]
    %171 = vset.pattern.permute.xlu0 0
    %172 = vperm.xlu0 %171, %v169
    %v173 = vpop.permute.xlu0 %172
    %v175 = vadd.f32 %v168, %v173
    %177 = vrot.lane.b32.xlu0 %v161, 9
    %v178 = vpop.permute.xlu0 %177
    %180 = vset.pattern.permute.xlu0 0
    %181 = vperm.xlu0 %180, %v162
    %v182 = vpop.permute.xlu0 %181
    %v184 = vmul.f32 %v178, %v182
    %v185 = vld [vmem:[%s5] sm:$0x1]
    %v186 = vlaneseq
    %v187 = vshrl.u32 %v186, 7
    %v188 = vsub.s32 0, %v187
    %v189 = vrot.slane %v185, %v188
    %v190 = vmul.f32 %v184, %v189
    %v191 = vadd.f32 %v175, %v190
    %192 = vrot.lane.b32.xlu0 %v161, 8
    %v193 = vpop.permute.xlu0 %192
    %vm195 = vcmask 64512
    %196 = vset.pattern.permute.xlu0 1
    %197 = vperm.xlu0 %196, %v162
    %v198 = vpop.permute.xlu0 %197
    %v200 = vmul.f32 %v193, %v198
    %v201 = vld [vmem:[%s5 + $0x1] sm:$0x1]
    %v202 = vlaneseq
    %v203 = vshrl.u32 %v202, 7
    %v204 = vsub.s32 0, %v203
    %v205 = vrot.slane %v201, %v204
    %v206 = vmul.f32 %v200, %v205
    %v207 = vadd.f32 %v191, %v206
    %208 = vrot.lane.b32.xlu0 %v161, 7
    %v209 = vpop.permute.xlu0 %208
    %211 = vset.pattern.permute.xlu0 2
    %212 = vperm.xlu0 %211, %v162
    %v213 = vpop.permute.xlu0 %212
    %v215 = vmul.f32 %v209, %v213
    %v216 = vld [vmem:[%s5 + $0x2] sm:$0x1]
    %v217 = vlaneseq
    %v218 = vshrl.u32 %v217, 7
    %v219 = vsub.s32 0, %v218
    %v220 = vrot.slane %v216, %v219
    %v221 = vmul.f32 %v215, %v220
    %v222 = vadd.f32 %v207, %v221
    %223 = vrot.lane.b32.xlu0 %v161, 1
    %v224 = vpop.permute.xlu0 %223
    %226 = vset.pattern.permute.xlu0 3
    %227 = vperm.xlu0 %226, %v162
    %v228 = vpop.permute.xlu0 %227
    %v230 = vmul.f32 %v224, %v228
    %v231 = vld [vmem:[%s5 + $0x3] sm:$0x1]
    %v232 = vlaneseq
    %v233 = vshrl.u32 %v232, 7
    %v234 = vsub.s32 0, %v233
    %v235 = vrot.slane %v231, %v234
    %v236 = vmul.f32 %v230, %v235
    %v237 = vadd.f32 %v222, %v236
    %238 = vrot.lane.b32.xlu0 %v161, 127
    %v239 = vpop.permute.xlu0 %238
    %241 = vset.pattern.permute.xlu0 5
    %242 = vperm.xlu0 %241, %v162
    %v243 = vpop.permute.xlu0 %242
    %v245 = vmul.f32 %v239, %v243
    %v246 = vld [vmem:[%s5 + $0x5] sm:$0x1]
    %v247 = vlaneseq
    %v248 = vshrl.u32 %v247, 7
    %v249 = vsub.s32 0, %v248
    %v250 = vrot.slane %v246, %v249
    %v251 = vmul.f32 %v245, %v250
    %v252 = vadd.f32 %v237, %v251
    %253 = vrot.lane.b32.xlu0 %v161, 121
    %v254 = vpop.permute.xlu0 %253
    %256 = vset.pattern.permute.xlu0 6
    %257 = vperm.xlu0 %256, %v162
    %v258 = vpop.permute.xlu0 %257
    %v260 = vmul.f32 %v254, %v258
    %v261 = vld [vmem:[%s5 + $0x6] sm:$0x1]
    %v262 = vlaneseq
    %v263 = vshrl.u32 %v262, 7
    %v264 = vsub.s32 0, %v263
    %v265 = vrot.slane %v261, %v264
    %v266 = vmul.f32 %v260, %v265
    %v267 = vadd.f32 %v252, %v266
    %268 = vrot.lane.b32.xlu0 %v161, 120
    %v269 = vpop.permute.xlu0 %268
    %271 = vset.pattern.permute.xlu0 7
    %272 = vperm.xlu0 %271, %v162
    %v273 = vpop.permute.xlu0 %272
    %v275 = vmul.f32 %v269, %v273
    %v276 = vld [vmem:[%s5 + $0x7] sm:$0x1]
    %v277 = vlaneseq
    %v278 = vshrl.u32 %v277, 7
    %v279 = vsub.s32 0, %v278
    %v280 = vrot.slane %v276, %v279
    %v281 = vmul.f32 %v275, %v280
    %v282 = vadd.f32 %v267, %v281
    %283 = vrot.lane.b32.xlu0 %v161, 119
    %v284 = vpop.permute.xlu0 %283
    %286 = vset.pattern.permute.xlu0 8
    %287 = vperm.xlu0 %286, %v162
    %v288 = vpop.permute.xlu0 %287
    %v290 = vmul.f32 %v284, %v288
    %v291 = vld [vmem:[%s5 + $0x8] sm:$0x1]
    %v292 = vlaneseq
    %v293 = vshrl.u32 %v292, 7
    %v294 = vsub.s32 0, %v293
    %v295 = vrot.slane %v291, %v294
    %v296 = vmul.f32 %v290, %v295
    %v297 = vadd.f32 %v282, %v296
    %v298 = vld [vmem:[%s6] sm:$0xf]
    %v299 = vpack.c.bf16 %v297, %v297
    %v300 = vld [vmem:[%s7] sm:$0xff]
    %302 = vset.pattern.permute.xlu0 0
    %303 = vperm.xlu0 %302, %v300
    %v304 = vpop.permute.xlu0 %303
    %v307 = vsel %vm195, %v298, 0
    %vm309 = vcmask 1043456
    %v311 = vsel %vm309, %v299, 0
    %313 = vmatprep.subr.bf16.mxu0 0
    %314 = vmatpush1.bf16.msra.mxu0 %v311
    %315 = vmatprep.subr.bf16.mxu0 0
    %316 = vmatpush1.bf16.msra.mxu0 0
    %317 = vmatprep.subr.bf16.mxu0 0
    %318 = vmatpush1.bf16.msra.mxu0 0
    %319 = vmatprep.subr.bf16.mxu0 0
    %320 = vmatpush1.bf16.msra.mxu0 0
    %321 = vmatprep.subr.bf16.mxu0 0
    %322 = vmatpush1.bf16.msra.mxu0 0
    %323 = vmatprep.subr.bf16.mxu0 0
    %324 = vmatpush1.bf16.msra.mxu0 0
    %325 = vmatprep.subr.bf16.mxu0 0
    %326 = vmatpush1.bf16.msra.mxu0 0
    %327 = vmatprep.subr.bf16.mxu0 0
    %328 = vmatpush1.bf16.msra.mxu0 0
    %329 = vmatprep.subr.bf16.mxu0 0
    %330 = vmatpush1.bf16.msra.mxu0 0
    %331 = vmatprep.subr.bf16.mxu0 0
    %332 = vmatpush1.bf16.msra.mxu0 0
    %333 = vmatprep.subr.bf16.mxu0 0
    %334 = vmatpush1.bf16.msra.mxu0 0
    %335 = vmatprep.subr.bf16.mxu0 0
    %336 = vmatpush1.bf16.msra.mxu0 0
    %337 = vmatprep.subr.bf16.mxu0 0
    %338 = vmatpush1.bf16.msra.mxu0 0
    %339 = vmatprep.subr.bf16.mxu0 0
    %340 = vmatpush1.bf16.msra.mxu0 0
    %341 = vmatprep.subr.bf16.mxu0 0
    %342 = vmatpush1.bf16.msra.mxu0 0
    %343 = vmatprep.subr.bf16.mxu0 0
    %344 = vmatpush1.bf16.msra.mxu0 0
    %345 = vmatprep.mubr.bf16.mxu0 0
    %346 = vmatmul.mubr.bf16.gmra.mrb[0].mxu0 %v307
    %v347 = vpop.f32.mrb[0].mxu0
    %v348 = vadd.f32 %v304, %v347
    %v349 = vpop.f32.mrb[0].mxu0
    %v350 = vpop.f32.mrb[0].mxu0
    %v351 = vpop.f32.mrb[0].mxu0
    %352 = vdwg.mxu0
    %v353 = vmax.f32 %v348, 0.0
    %v354 = vld [vmem:[%s9] sm:$0xf]
    %v355 = vld [vmem:[%s8] sm:$0x3]
    %v356 = vld [vmem:[%s10] sm:$0xff]
    %358 = vset.pattern.permute.xlu0 0
    %359 = vperm.xlu0 %358, %v356
    %v360 = vpop.permute.xlu0 %359
    %vm362 = vcmask 31744
    %v364 = vsel %vm362, %v354, 0
    %v367 = vsel %vm117, %v355, 0
    %369 = vmatprep.subr.bf16.mxu0 0
    %370 = vmatpush1.bf16.msra.mxu0 %v367
    %371 = vmatprep.subr.bf16.mxu0 0
    %372 = vmatpush1.bf16.msra.mxu0 0
    %373 = vmatprep.subr.bf16.mxu0 0
    %374 = vmatpush1.bf16.msra.mxu0 0
    %375 = vmatprep.subr.bf16.mxu0 0
    %376 = vmatpush1.bf16.msra.mxu0 0
    %377 = vmatprep.subr.bf16.mxu0 0
    %378 = vmatpush1.bf16.msra.mxu0 0
    %379 = vmatprep.subr.bf16.mxu0 0
    %380 = vmatpush1.bf16.msra.mxu0 0
    %381 = vmatprep.subr.bf16.mxu0 0
    %382 = vmatpush1.bf16.msra.mxu0 0
    %383 = vmatprep.subr.bf16.mxu0 0
    %384 = vmatpush1.bf16.msra.mxu0 0
    %385 = vmatprep.subr.bf16.mxu0 0
    %386 = vmatpush1.bf16.msra.mxu0 0
    %387 = vmatprep.subr.bf16.mxu0 0
    %388 = vmatpush1.bf16.msra.mxu0 0
    %389 = vmatprep.subr.bf16.mxu0 0
    %390 = vmatpush1.bf16.msra.mxu0 0
    %391 = vmatprep.subr.bf16.mxu0 0
    %392 = vmatpush1.bf16.msra.mxu0 0
    %393 = vmatprep.subr.bf16.mxu0 0
    %394 = vmatpush1.bf16.msra.mxu0 0
    %395 = vmatprep.subr.bf16.mxu0 0
    %396 = vmatpush1.bf16.msra.mxu0 0
    %397 = vmatprep.subr.bf16.mxu0 0
    %398 = vmatpush1.bf16.msra.mxu0 0
    %399 = vmatprep.subr.bf16.mxu0 0
    %400 = vmatpush1.bf16.msra.mxu0 0
    %401 = vmatprep.mubr.bf16.mxu0 0
    %402 = vmatmul.mubr.bf16.gmra.mrb[0].mxu0 %v364
    %v403 = vpop.f32.mrb[0].mxu0
    %v404 = vadd.f32 %v360, %v403
    %v405 = vpop.f32.mrb[0].mxu0
    %v406 = vpop.f32.mrb[0].mxu0
    %v407 = vpop.f32.mrb[0].mxu0
    %408 = vdwg.mxu0
    %v409 = vadd.f32 %v353, %v404
    %410 = vst [vmem:[#allocation5] sm:$0xff] %v409
    // Predicated region
    $region50: #{tpu_custom_call.1} parent=1 // pred_check
      _
    $region51: #{tpu_custom_call.1} parent=1 // pred_check_branch
      %412 = sbr.rel (0) target = $region53
    $region52: #{tpu_custom_call.1} parent=1 // pred_region
      %s414 = ssub.s32 128, 128
      %415 = vsyncadd [#allocation4], %s414
      %s417 = sshll.u32 [#allocation5], 4
      %s418 = int_to_ptr.vmem [resolvable:$true] %s417
      %420 = dma.vmem_to_hbm [thread:$0]  %s418, 128, %s11, [#allocation4]
    $region53: #{tpu_custom_call.1} parent=1 // pred_fallthru
      _
    // Predicated region
    $region54: #{tpu_custom_call.1} parent=1 // pred_check
      _
    $region55: #{tpu_custom_call.1} parent=1 // pred_check_branch
      %422 = sbr.rel (0) target = $region57
    $region56: #{tpu_custom_call.1} parent=1 // pred_region
      %423 = dma.done [#allocation4], 128
    $region57: #{tpu_custom_call.1} parent=1 // pred_fallthru
      _
    %424 = vsyncpa [#allocation3], 1
    %425 = vsyncpa [#allocation4], 1

</llo_original>
